<compile_context>
chip_gen: v7x
topology: tpu7x:2x2x1
jax: 0.10.0
libtpu: 0.0.40
codegen_flags: <defaults>
</compile_context>

<pallas_src>
import functools

import jax
import jax.numpy as jnp
from jax.experimental import pallas as pl
from jax.experimental.pallas import tpu as pltpu

_LANE = 128
_SUBLANE = 8


def _dice_kernel(p_ref, t_ref, out_ref, inter_acc, union_acc, *, smooth):
    k = pl.program_id(0)

    @pl.when(k == 0)
    def _():
        inter_acc[...] = jnp.zeros_like(inter_acc)
        union_acc[...] = jnp.zeros_like(union_acc)

    p = p_ref[...].astype(jnp.float32)   # (B, tile_rows, 128)
    t = t_ref[...].astype(jnp.float32)

    # Hot path: collapse only the row (sublane) axis; keep lanes resident.
    inter_acc[...] += jnp.sum(p * t, axis=1)        # (B, 128)
    union_acc[...] += jnp.sum(p + t, axis=1)        # fused single reduce

    @pl.when(k == pl.num_programs(0) - 1)
    def _():
        inter = jnp.sum(inter_acc[...], axis=1, keepdims=True)   # (B, 1)
        union = jnp.sum(union_acc[...], axis=1, keepdims=True)   # (B, 1)
        dice = (2.0 * inter + smooth) / (union + smooth)
        loss = jnp.mean(1.0 - dice)
        out_ref[...] = jnp.reshape(loss, (1, 1))


def dice_loss(prediction, target, smooth=1e-12,
              target_block_bytes=2 * 1024 * 1024):
    assert prediction.shape == target.shape, (
        "the dimensions of prediction and target do not match/diceloss")
    batch_size = prediction.shape[0]

    # Flatten exactly like torch .view(batch_size, -1) (row-major).
    p2 = prediction.reshape(batch_size, -1)
    t2 = target.reshape(batch_size, -1)
    n = p2.shape[1]

    # Lane-dense tiling: rows of 128 lanes, tile_rows a multiple of 8,
    # block sized for ~target_block_bytes of f32 per input per step.
    rows = -(-n // _LANE)                                  # ceil(n / 128)
    rows_cap = (target_block_bytes // (batch_size * _LANE * 4)) // _SUBLANE
    rows_cap = max(_SUBLANE, rows_cap * _SUBLANE)
    rows_aligned = -(-rows // _SUBLANE) * _SUBLANE
    tile_rows = min(rows_cap, rows_aligned)
    rows_padded = -(-rows // tile_rows) * tile_rows
    n_padded = rows_padded * _LANE

    # Zero-pad N (exact for dice: zeros add nothing to inter or union).
    if n_padded != n:
        pad = n_padded - n
        p2 = jnp.pad(p2, ((0, 0), (0, pad)))
        t2 = jnp.pad(t2, ((0, 0), (0, pad)))
    p3 = p2.reshape(batch_size, rows_padded, _LANE)
    t3 = t2.reshape(batch_size, rows_padded, _LANE)

    grid = (rows_padded // tile_rows,)

    out = pl.pallas_call(
        functools.partial(_dice_kernel, smooth=smooth),
        out_shape=jax.ShapeDtypeStruct((1, 1), jnp.float32),
        grid_spec=pltpu.PrefetchScalarGridSpec(
            num_scalar_prefetch=0,
            grid=grid,
            in_specs=[
                pl.BlockSpec((batch_size, tile_rows, _LANE),
                             lambda k: (0, k, 0)),
                pl.BlockSpec((batch_size, tile_rows, _LANE),
                             lambda k: (0, k, 0)),
            ],
            out_specs=pl.BlockSpec((1, 1), lambda k: (0, 0)),
            scratch_shapes=[
                pltpu.VMEM((batch_size, _LANE), jnp.float32),
                pltpu.VMEM((batch_size, _LANE), jnp.float32),
            ],
        ),
        compiler_params=pltpu.CompilerParams(
            dimension_semantics=("arbitrary",),
            vmem_limit_bytes=32 * 1024 * 1024,
        ),
    )(p3, t3)
    return out[0, 0]


def _dice_loss_ref(prediction, target, smooth=1e-12):
    b = prediction.shape[0]
    p = prediction.reshape(b, -1).astype(jnp.float32)
    t = target.reshape(b, -1).astype(jnp.float32)
    inter = jnp.sum(p * t, axis=1)
    union = jnp.sum(p, axis=1) + jnp.sum(t, axis=1)
    dice = (2.0 * inter + smooth) / (union + smooth)
    return jnp.mean(1.0 - dice)


if __name__ == "__main__":
    key = jax.random.PRNGKey(0)
    kp, kt, kp2, kt2 = jax.random.split(key, 4)

    # Small shapes consistent with a segmentation map: (B, C, H, W)
    prediction = jax.nn.sigmoid(
        jax.random.normal(kp, (2, 4, 16, 16), dtype=jnp.float32))
    target = (jax.random.uniform(kt, (2, 4, 16, 16)) > 0.5).astype(jnp.float32)

    loss = jax.block_until_ready(dice_loss(prediction, target))
    ref = jax.block_until_ready(_dice_loss_ref(prediction, target))
    assert jnp.allclose(loss, ref, rtol=1e-5, atol=1e-6), (loss, ref)

    # Second check: non-lane-divisible N exercises the zero-padding path.
    prediction2 = jax.nn.sigmoid(
        jax.random.normal(kp2, (2, 3, 17, 19), dtype=jnp.float32))
    target2 = (jax.random.uniform(kt2, (2, 3, 17, 19)) > 0.5).astype(
        jnp.float32)
    loss2 = jax.block_until_ready(dice_loss(prediction2, target2))
    ref2 = jax.block_until_ready(_dice_loss_ref(prediction2, target2))
    assert jnp.allclose(loss2, ref2, rtol=1e-5, atol=1e-6), (loss2, ref2)

    print("KERNEL_OK")
</pallas_src>

<mosaic_0001>
module attributes {stable_mosaic.version = 11 : i64} {
  func.func @_dice_kernel(%arg0: i32, %arg1: memref<2x8x128xf32, #tpu.memory_space<vmem>>, %arg2: memref<2x8x128xf32, #tpu.memory_space<vmem>>, %arg3: memref<1x1xf32, #tpu.memory_space<vmem>>, %arg4: memref<2x128xf32, #tpu.memory_space<vmem>>, %arg5: memref<2x128xf32, #tpu.memory_space<vmem>>) attributes {dimension_semantics = [#tpu.dimension_semantics<arbitrary>], iteration_bounds = array<i64: 1>, scalar_prefetch = 0 : i64, scratch_operands = 2 : i64, tpu.core_type = #tpu.core_type<tc>, window_params = [{transform_indices = @transform_0, window_bounds = array<i64: 2, 8, 128>}, {transform_indices = @transform_1, window_bounds = array<i64: 2, 8, 128>}, {pipeline_mode = #tpu.pipeline_mode<synchronous>, transform_indices = @transform_2, window_bounds = array<i64: 1, 1>}]} {
    %c0_i32 = arith.constant 0 : i32
    %0 = arith.cmpi eq, %arg0, %c0_i32 : i32
    %1 = arith.extui %0 : i1 to i32
    %c0_i32_0 = arith.constant 0 : i32
    %2 = arith.cmpi ne, %1, %c0_i32_0 : i32
    scf.if %2 {
      %cst_17 = arith.constant 0.000000e+00 : f32
      %18 = vector.broadcast %cst_17 : f32 to vector<2x128xf32>
      %c0_18 = arith.constant 0 : index
      %c0_19 = arith.constant 0 : index
      %19 = vector.load %arg4[%c0_18, %c0_19] : memref<2x128xf32, #tpu.memory_space<vmem>>, vector<2x128xf32>
      tpu.vector_store %arg4[%c0_18, %c0_19], %18 {strides = array<i32>} : memref<2x128xf32, #tpu.memory_space<vmem>>, vector<2x128xf32>,
      %cst_20 = arith.constant 0.000000e+00 : f32
      %20 = vector.broadcast %cst_20 : f32 to vector<2x128xf32>
      %c0_21 = arith.constant 0 : index
      %c0_22 = arith.constant 0 : index
      %21 = vector.load %arg5[%c0_21, %c0_22] : memref<2x128xf32, #tpu.memory_space<vmem>>, vector<2x128xf32>
      tpu.vector_store %arg5[%c0_21, %c0_22], %20 {strides = array<i32>} : memref<2x128xf32, #tpu.memory_space<vmem>>, vector<2x128xf32>,
    } else {
    }
    %c0 = arith.constant 0 : index
    %c0_1 = arith.constant 0 : index
    %c0_2 = arith.constant 0 : index
    %3 = vector.load %arg1[%c0, %c0_1, %c0_2] : memref<2x8x128xf32, #tpu.memory_space<vmem>>, vector<2x8x128xf32>
    %c0_3 = arith.constant 0 : index
    %c0_4 = arith.constant 0 : index
    %c0_5 = arith.constant 0 : index
    %4 = vector.load %arg2[%c0_3, %c0_4, %c0_5] : memref<2x8x128xf32, #tpu.memory_space<vmem>>, vector<2x8x128xf32>
    %c0_6 = arith.constant 0 : index
    %c0_7 = arith.constant 0 : index
    %5 = vector.load %arg4[%c0_6, %c0_7] : memref<2x128xf32, #tpu.memory_space<vmem>>, vector<2x128xf32>
    %6 = arith.mulf %3, %4 : vector<2x8x128xf32>
    %cst = arith.constant dense<0.000000e+00> : vector<2x128xf32>
    %7 = vector.multi_reduction <add>, %6, %cst [1] : vector<2x8x128xf32> to vector<2x128xf32>
    %8 = arith.addf %5, %7 : vector<2x128xf32>
    %c0_8 = arith.constant 0 : index
    %c0_9 = arith.constant 0 : index
    %9 = vector.load %arg4[%c0_8, %c0_9] : memref<2x128xf32, #tpu.memory_space<vmem>>, vector<2x128xf32>
    tpu.vector_store %arg4[%c0_8, %c0_9], %8 {strides = array<i32>} : memref<2x128xf32, #tpu.memory_space<vmem>>, vector<2x128xf32>,
    %c0_10 = arith.constant 0 : index
    %c0_11 = arith.constant 0 : index
    %10 = vector.load %arg5[%c0_10, %c0_11] : memref<2x128xf32, #tpu.memory_space<vmem>>, vector<2x128xf32>
    %11 = arith.addf %3, %4 : vector<2x8x128xf32>
    %cst_12 = arith.constant dense<0.000000e+00> : vector<2x128xf32>
    %12 = vector.multi_reduction <add>, %11, %cst_12 [1] : vector<2x8x128xf32> to vector<2x128xf32>
    %13 = arith.addf %10, %12 : vector<2x128xf32>
    %c0_13 = arith.constant 0 : index
    %c0_14 = arith.constant 0 : index
    %14 = vector.load %arg5[%c0_13, %c0_14] : memref<2x128xf32, #tpu.memory_space<vmem>>, vector<2x128xf32>
    tpu.vector_store %arg5[%c0_13, %c0_14], %13 {strides = array<i32>} : memref<2x128xf32, #tpu.memory_space<vmem>>, vector<2x128xf32>,
    %c0_i32_15 = arith.constant 0 : i32
    %15 = arith.cmpi eq, %arg0, %c0_i32_15 : i32
    %16 = arith.extui %15 : i1 to i32
    %c0_i32_16 = arith.constant 0 : i32
    %17 = arith.cmpi ne, %16, %c0_i32_16 : i32
    scf.if %17 {
      %c0_17 = arith.constant 0 : index
      %c0_18 = arith.constant 0 : index
      %18 = vector.load %arg4[%c0_17, %c0_18] : memref<2x128xf32, #tpu.memory_space<vmem>>, vector<2x128xf32>
      %cst_19 = arith.constant dense<0.000000e+00> : vector<2xf32>
      %19 = vector.multi_reduction <add>, %18, %cst_19 [1] : vector<2x128xf32> to vector<2xf32>
      %20 = vector.shape_cast %19 : vector<2xf32> to vector<2x1xf32>
      %c0_20 = arith.constant 0 : index
      %c0_21 = arith.constant 0 : index
      %21 = vector.load %arg5[%c0_20, %c0_21] : memref<2x128xf32, #tpu.memory_space<vmem>>, vector<2x128xf32>
      %cst_22 = arith.constant dense<0.000000e+00> : vector<2xf32>
      %22 = vector.multi_reduction <add>, %21, %cst_22 [1] : vector<2x128xf32> to vector<2xf32>
      %23 = vector.shape_cast %22 : vector<2xf32> to vector<2x1xf32>
      %cst_23 = arith.constant 2.000000e+00 : f32
      %24 = vector.broadcast %cst_23 : f32 to vector<2x1xf32>
      %25 = arith.mulf %24, %20 : vector<2x1xf32>
      %cst_24 = arith.constant 9.99999996E-13 : f32
      %26 = vector.broadcast %cst_24 : f32 to vector<2x1xf32>
      %27 = arith.addf %25, %26 : vector<2x1xf32>
      %cst_25 = arith.constant 9.99999996E-13 : f32
      %28 = vector.broadcast %cst_25 : f32 to vector<2x1xf32>
      %29 = arith.addf %23, %28 : vector<2x1xf32>
      %30 = arith.divf %27, %29 : vector<2x1xf32>
      %cst_26 = arith.constant 1.000000e+00 : f32
      %31 = vector.broadcast %cst_26 : f32 to vector<2x1xf32>
      %32 = arith.subf %31, %30 : vector<2x1xf32>
      %33 = vector.shape_cast %32 : vector<2x1xf32> to vector<1x2x1xf32>
      %cst_27 = arith.constant dense<0.000000e+00> : vector<1xf32>
      %34 = vector.multi_reduction <add>, %33, %cst_27 [1, 2] : vector<1x2x1xf32> to vector<1xf32>
      %35 = vector.shape_cast %34 : vector<1xf32> to vector<1x1x1xf32>
      %36 = vector.extract %35[0, 0, 0] : f32 from vector<1x1x1xf32>
      %cst_28 = arith.constant 2.000000e+00 : f32
      %37 = arith.divf %36, %cst_28 : f32
      %38 = vector.broadcast %37 : f32 to vector<1x1xf32>
      %c0_29 = arith.constant 0 : index
      %c0_30 = arith.constant 0 : index
      %39 = vector.load %arg3[%c0_29, %c0_30] : memref<1x1xf32, #tpu.memory_space<vmem>>, vector<1x1xf32>
      tpu.vector_store %arg3[%c0_29, %c0_30], %38 {strides = array<i32>} : memref<1x1xf32, #tpu.memory_space<vmem>>, vector<1x1xf32>,
    } else {
    }
    return
  }
  func.func @transform_0(%arg0: i32) -> (i32, i32, i32) {
    %c0_i32 = arith.constant 0 : i32
    %c0_i32_0 = arith.constant 0 : i32
    %c0_i32_1 = arith.constant 0 : i32
    return %c0_i32, %arg0, %c0_i32_0 : i32, i32, i32
  }
  func.func @transform_1(%arg0: i32) -> (i32, i32, i32) {
    %c0_i32 = arith.constant 0 : i32
    %c0_i32_0 = arith.constant 0 : i32
    %c0_i32_1 = arith.constant 0 : i32
    return %c0_i32, %arg0, %c0_i32_0 : i32, i32, i32
  }
  func.func @transform_2(%arg0: i32) -> (i32, i32) {
    %c0_i32 = arith.constant 0 : i32
    %c0_i32_0 = arith.constant 0 : i32
    %c0_i32_1 = arith.constant 0 : i32
    return %c0_i32, %c0_i32_0 : i32, i32
  }
}

</mosaic_0001>

<llo_original>
// kernel: tpu_custom_call.1
$region0: #{tpu_custom_call.1}
  #allocation0 [shape = 'u32[]', space=smem, size = 0x4, offset = 0x4, fixed_abs, tag = 'smem constant byte address 0x4 - core index']
  #allocation1 [shape = 'u32[144,128]{1,0:T(1,128)}', space=vmem, size = 0x12000, scoped, tag = 'internal scratch']
  #allocation2 [shape = 'f32[2,128]{1,0:T(2,128)}', space=vmem, size = 0x400, scoped, tag = 'scratch operand']
  #allocation3 [shape = 'f32[2,128]{1,0:T(2,128)}', space=vmem, size = 0x400, scoped, tag = 'scratch operand']
  %s0 = inlined_call_operand.hbm [shape: f32[2,8,128], index: 0, kind: input, shape index: {}]
  %s1 = inlined_call_operand.hbm [shape: f32[2,8,128], index: 1, kind: input, shape index: {}]
  %s2 = inlined_call_operand.hbm [shape: f32[1,1], index: 2, kind: output, shape index: {}]
  %s3 = sld [smem:[#allocation0]]
  $region34: #{tpu_custom_call.1} parent=0
    _
  %s5 = ssub.s32 1, %s3
  %s6 = scalar_select 0, %s5, %s3
  $region1: #{tpu_custom_call.1} parent=0
    #allocation4 [shape = 'u8[8192]{0}', space=vmem, size = 0x2000, scoped, tag = 'input window, operand 0, single buffered']
    #allocation5 [shape = 's32[1]{0}', space=sflag, size = 0x4, scoped, tag = 'scoped memory for tpu_custom_call.1']
    #allocation6 [shape = 's32[1]{0}', space=sflag, size = 0x4, scoped, tag = 'scoped memory for tpu_custom_call.1']
    #allocation7 [shape = 'u8[8192]{0}', space=vmem, size = 0x2000, scoped, tag = 'input window, operand 1, single buffered']
    #allocation8 [shape = 's32[1]{0}', space=sflag, size = 0x4, scoped, tag = 'scoped memory for tpu_custom_call.1']
    #allocation9 [shape = 'u8[512]{0}', space=vmem, size = 0x400, scoped, tag = 'output window, operand 0, single buffered']
    %7 = vsyncpa [#allocation5], 0
    %8 = vsyncpa [#allocation8], 0
    %9 = vsyncpa [#allocation6], 0
    // Predicated region
    $region2: #{tpu_custom_call.1} parent=1 // pred_check
      _
    $region3: #{tpu_custom_call.1} parent=1 // pred_check_branch
      %11 = sbr.rel (0) target = $region5
    $region4: #{tpu_custom_call.1} parent=1 // pred_region
      %s13 = ssub.s32 256, 256
      %14 = vsyncadd [#allocation5], %s13
      %s15 = sshll.u32 [#allocation4], 4
      %s16 = int_to_ptr.vmem [resolvable:$true] %s15
      %21 = dma.hbm_to_vmem [thread:$0]  %s0, 256, %s16, [#allocation5], 128, 128, 8
    $region5: #{tpu_custom_call.1} parent=1 // pred_fallthru
      _
    // Predicated region
    $region6: #{tpu_custom_call.1} parent=1 // pred_check
      _
    $region7: #{tpu_custom_call.1} parent=1 // pred_check_branch
      %23 = sbr.rel (0) target = $region9
    $region8: #{tpu_custom_call.1} parent=1 // pred_region
      %s25 = ssub.s32 256, 256
      %26 = vsyncadd [#allocation8], %s25
      %s27 = sshll.u32 [#allocation7], 4
      %s28 = int_to_ptr.vmem [resolvable:$true] %s27
      %33 = dma.hbm_to_vmem [thread:$0]  %s1, 256, %s28, [#allocation8], 128, 128, 8
    $region9: #{tpu_custom_call.1} parent=1 // pred_fallthru
      _
    // Predicated region
    $region10: #{tpu_custom_call.1} parent=1 // pred_check
      _
    $region11: #{tpu_custom_call.1} parent=1 // pred_check_branch
      %35 = sbr.rel (0) target = $region13
    $region12: #{tpu_custom_call.1} parent=1 // pred_region
      %36 = dma.done [#allocation5], 256
    $region13: #{tpu_custom_call.1} parent=1 // pred_fallthru
      _
    // Predicated region
    $region14: #{tpu_custom_call.1} parent=1 // pred_check
      _
    $region15: #{tpu_custom_call.1} parent=1 // pred_check_branch
      %38 = sbr.rel (0) target = $region17
    $region16: #{tpu_custom_call.1} parent=1 // pred_region
      %39 = dma.done [#allocation8], 256
    $region17: #{tpu_custom_call.1} parent=1 // pred_fallthru
      _
    %p40 = scmp.eq.s32.totalorder 0, 0
    // Predicated region
    $region18: #{tpu_custom_call.1} parent=1 // pred_check
      %p41 = pneg %p40
    $region19: #{tpu_custom_call.1} parent=1 // pred_check_branch
      %43 = sbr.rel (%p41) target = $region21
    $region20: #{tpu_custom_call.1} parent=1 // pred_region
      %44 = vst [vmem:[#allocation2] sm:$0x3] 0.0
      %45 = vst [vmem:[#allocation3] sm:$0x3] 0.0
    $region21: #{tpu_custom_call.1} parent=1 // pred_fallthru
      _
    %v46 = vld [vmem:[#allocation4] sm:$0xff]
    %v47 = vld [vmem:[#allocation4 + $0x8] sm:$0xff]
    %v48 = vld [vmem:[#allocation7] sm:$0xff]
    %v49 = vld [vmem:[#allocation7 + $0x8] sm:$0xff]
    %v50 = vld [vmem:[#allocation2] sm:$0x3]
    %v51 = vmul.f32 %v46, %v48
    %v52 = vmul.f32 %v47, %v49
    %v53 = vrot.slane %v51, 4
    %v54 = vadd.f32 %v51, %v53
    %v55 = vrot.slane %v54, 2
    %v56 = vadd.f32 %v54, %v55
    %v57 = vrot.slane %v56, 1
    %v58 = vadd.f32 %v56, %v57
    %v59 = vrot.slane %v52, 4
    %v60 = vadd.f32 %v52, %v59
    %v61 = vrot.slane %v60, 2
    %v62 = vadd.f32 %v60, %v61
    %v63 = vrot.slane %v62, 1
    %v64 = vadd.f32 %v62, %v63
    %vm67 = vcmask 1041409
    %v68 = vsel %vm67, %v64, %v58
    %v70 = vadd.f32 %v50, %v68
    %71 = vst [vmem:[#allocation2] sm:$0x3] %v70
    %v72 = vld [vmem:[#allocation3] sm:$0x3]
    %v73 = vadd.f32 %v46, %v48
    %v74 = vadd.f32 %v47, %v49
    %v75 = vrot.slane %v73, 4
    %v76 = vadd.f32 %v73, %v75
    %v77 = vrot.slane %v76, 2
    %v78 = vadd.f32 %v76, %v77
    %v79 = vrot.slane %v78, 1
    %v80 = vadd.f32 %v78, %v79
    %v81 = vrot.slane %v74, 4
    %v82 = vadd.f32 %v74, %v81
    %v83 = vrot.slane %v82, 2
    %v84 = vadd.f32 %v82, %v83
    %v85 = vrot.slane %v84, 1
    %v86 = vadd.f32 %v84, %v85
    %v89 = vsel %vm67, %v86, %v80
    %v91 = vadd.f32 %v72, %v89
    %92 = vst [vmem:[#allocation3] sm:$0x3] %v91
    // Predicated region
    $region22: #{tpu_custom_call.1} parent=1 // pred_check
      %p93 = pneg %p40
    $region23: #{tpu_custom_call.1} parent=1 // pred_check_branch
      %95 = sbr.rel (%p93) target = $region25
    $region24: #{tpu_custom_call.1} parent=1 // pred_region
      %v96 = vld [vmem:[#allocation2] sm:$0x3]
      %vm97 = vcmask 1041408
      %v98 = vsel %vm97, %v96, 0.0
      %99 = vadd.xlane.f32.xlu0 %v98
      %v100 = vpop.xlane.xlu0 %99
      %v101 = vld [vmem:[#allocation3] sm:$0x3]
      %v102 = vsel %vm97, %v101, 0.0
      %103 = vadd.xlane.f32.xlu0 %v102
      %v104 = vpop.xlane.xlu0 %103
      %v105 = vmul.f32 %v100, 2.0
      %v106 = vadd.f32 %v105, 1e-12
      %v107 = vadd.f32 %v104, 1e-12
      %v108 = vrcp.pop %v107
      %v109 = vmul.f32 %v106, %v108
      %v110 = vsub.f32 1.0, %v109
      %vm111 = vcmask 1024
      %v112 = vsel %vm111, %v110, 0.0
      %113 = vadd.xlane.f32.xlu0 %v112
      %v114 = vpop.xlane.xlu0 %113
      %v115 = vrot.slane %v114, 4
      %v116 = vadd.f32 %v114, %v115
      %v117 = vrot.slane %v116, 2
      %v118 = vadd.f32 %v116, %v117
      %v119 = vrot.slane %v118, 1
      %v120 = vadd.f32 %v118, %v119
      %s121 = vtos %v120
      %v122 = vrcp.pop 2.0
      %s123 = vtos %v122
      %s124 = smul.f32 %s121, %s123
      %v125 = vstv %s124
      %vm126 = vcmask 0
      %127 = vst.msk [vmem:[#allocation9] sm:$0x1] %vm126, %v125
    $region25: #{tpu_custom_call.1} parent=1 // pred_fallthru
      _
    // Predicated region
    $region26: #{tpu_custom_call.1} parent=1 // pred_check
      _
    $region27: #{tpu_custom_call.1} parent=1 // pred_check_branch
      %129 = sbr.rel (0) target = $region29
    $region28: #{tpu_custom_call.1} parent=1 // pred_region
      %s131 = ssub.s32 16, 16
      %132 = vsyncadd [#allocation6], %s131
      %s134 = sshll.u32 [#allocation9], 4
      %s135 = int_to_ptr.vmem [resolvable:$true] %s134
      %137 = dma.vmem_to_hbm [thread:$0]  %s135, 16, %s2, [#allocation6]
    $region29: #{tpu_custom_call.1} parent=1 // pred_fallthru
      _
    // Predicated region
    $region30: #{tpu_custom_call.1} parent=1 // pred_check
      _
    $region31: #{tpu_custom_call.1} parent=1 // pred_check_branch
      %139 = sbr.rel (0) target = $region33
    $region32: #{tpu_custom_call.1} parent=1 // pred_region
      %140 = dma.done [#allocation6], 16
    $region33: #{tpu_custom_call.1} parent=1 // pred_fallthru
      _
    %141 = vsyncpa [#allocation5], 1
    %142 = vsyncpa [#allocation8], 1
    %143 = vsyncpa [#allocation6], 1

</llo_original>
